<compile_context>
chip_gen: v7x
topology: tpu7x:2x2x1
jax: 0.10.0
libtpu: 0.0.40
codegen_flags: <defaults>
</compile_context>

<pallas_src>
import functools

import jax
import jax.numpy as jnp
from jax.experimental import pallas as pl
from jax.experimental.pallas import tpu as pltpu

K = 3  # TAGConv default number of hops


def _full_spec(shape):
    nd = len(shape)
    return pl.BlockSpec(shape, lambda i, _nd=nd: (0,) * _nd)


# --------------------------- fused forward kernel --------------------------- #
def tag_fused_kernel(a_ref, x_ref, w1_ref, b1_ref, w2_ref, b2_ref,
                     mask_ref, maskt_ref, invcnt_ref, wfc_ref, bfc_ref, o_ref,
                     *, k_hops, num_graphs):
    # a: (N, N) bf16, x: (N, F0), w1: ((K+1)*F0, 8), b1: (1, 8),
    # w2: ((K+1)*8, 16), b2: (1, 16), mask: (B, N), maskt: (N, B),
    # invcnt: (B, 1), wfc: (32, 2), bfc: (1, 2), o: (B, 2)
    a = a_ref[...]                                   # single HBM read of the big operand

    def tagconv_relu(x, w_ref, b_ref):
        # Hop features [x, A x, ..., A^K x] stacked along lanes; the K+1
        # per-hop linears collapse into one wide matmul (wider MXU contraction,
        # one result pop instead of K+1 pops + K vector adds).
        hops = [x]
        h_bf = x.astype(jnp.bfloat16)
        for _ in range(k_hops):
            h = jnp.dot(a, h_bf, preferred_element_type=jnp.float32)   # MXU, f32 acc
            hops.append(h)
            h_bf = h.astype(jnp.bfloat16)
        stacked = jnp.concatenate(hops, axis=1)      # (N, (K+1)*Fin), f32
        out = jnp.dot(stacked, w_ref[...], preferred_element_type=jnp.float32) + b_ref[...]
        return jnp.maximum(out, 0.0)

    h = tagconv_relu(x_ref[...], w1_ref, b1_ref)     # (N, 8)   — stays in VMEM
    h = tagconv_relu(h, w2_ref, b2_ref)              # (N, 16)

    # global mean pool: mask matmul (MXU) x precomputed reciprocal counts
    mean = jnp.dot(mask_ref[...], h, preferred_element_type=jnp.float32) * invcnt_ref[...]

    # global max pool: per-graph 2D masked max (static unrolled loop over B);
    # O(B*F) accumulators instead of materializing a [B, N, F] broadcast.
    maskt = maskt_ref[...]                           # (N, B)
    neg = jnp.float32(-1e30)
    mx_rows = []
    for g in range(num_graphs):
        mg = maskt[:, g:g + 1]                       # (N, 1) lane slice
        masked = jnp.where(mg > 0, h, neg)           # (N, 16), f32 (keeps sentinel exact)
        mx_rows.append(jnp.max(masked, axis=0, keepdims=True))
    mx = jnp.concatenate(mx_rows, axis=0)            # (B, 16)

    feat = jnp.concatenate([mx, mean], axis=1)       # [gmp, gap] -> (B, 32)
    o_ref[...] = (jnp.dot(feat, wfc_ref[...], preferred_element_type=jnp.float32)
                  + bfc_ref[...])


def tag_fused(a, x, w1s, b1, w2s, b2, mask, maskt, invcnt, wfc, bfc, *, num_graphs):
    b, c = mask.shape[0], wfc.shape[-1]
    kern = functools.partial(tag_fused_kernel, k_hops=K, num_graphs=num_graphs)
    operands = (a, x, w1s, b1, w2s, b2, mask, maskt, invcnt, wfc, bfc)
    return pl.pallas_call(
        kern,
        out_shape=jax.ShapeDtypeStruct((b, c), jnp.float32),
        grid=(1,),
        in_specs=[_full_spec(t.shape) for t in operands],
        out_specs=_full_spec((b, c)),
        compiler_params=pltpu.CompilerParams(
            dimension_semantics=("arbitrary",),
            # Explicit VMEM budget so larger N does not hit the 16/32 MiB scoped
            # defaults long before physical VMEM; 48 MiB is safe on v5e/v6e/v7x.
            vmem_limit_bytes=48 * 1024 * 1024,
        ),
    )(*operands)


# --------------------------------- glue ------------------------------------ #
def build_norm_adj(edge_index, edge_weight, num_nodes):
    """gcn_norm without self-loops (TAGConv default), densified, cast to bf16.

    A_hat[dst, src] = deg^-1/2[src] * w * deg^-1/2[dst],
    deg[i] = sum of edge_weight of edges with dst == i.
    """
    row, col = edge_index[0], edge_index[1]            # row = src, col = dst
    deg = jnp.zeros((num_nodes,), jnp.float32).at[col].add(edge_weight)
    dinv = jnp.where(deg > 0, 1.0 / jnp.sqrt(deg), 0.0)
    norm = dinv[row] * edge_weight * dinv[col]
    a = jnp.zeros((num_nodes, num_nodes), jnp.float32).at[col, row].add(norm)
    # bf16 halves HBM traffic + VMEM footprint of the dominant [N,N] operand;
    # all MXU dots against it still accumulate in f32.
    return a.astype(jnp.bfloat16)
    # TODO(synk): for large genuinely-sparse graphs, replace the dense A_hat
    # with a scalar-prefetch / gather-based SpMM (PrefetchScalarGridSpec) and
    # row-tile A so its DMA pipelines behind the hop matmuls.


def tag_forward(x, edge_index, edge_weight, batch, params):
    n = x.shape[0]
    num_graphs = int(params["num_graphs"])
    a_hat = build_norm_adj(edge_index, edge_weight, n)          # bf16 (N, N)

    # batch membership mask / reciprocal counts (guarded against empty graphs)
    mask = (batch[None, :] == jnp.arange(num_graphs)[:, None]).astype(jnp.float32)
    cnt = jnp.sum(mask, axis=1, keepdims=True)
    invcnt = jnp.where(cnt > 0, 1.0 / cnt, 0.0)

    # stack per-hop weights so each TAGConv layer is a single wide matmul
    w1s = params["w1"].reshape(-1, params["w1"].shape[-1])      # ((K+1)*Fin, 8)
    w2s = params["w2"].reshape(-1, params["w2"].shape[-1])      # ((K+1)*8, 16)

    return tag_fused(a_hat, x, w1s, params["b1"], w2s, params["b2"],
                     mask, mask.T, invcnt, params["wfc"], params["bfc"],
                     num_graphs=num_graphs)


def init_params(key, num_features, num_graphs):
    k1, k2, k3, k4, k5, k6 = jax.random.split(key, 6)

    def glorot(k, shape):
        fan_in, fan_out = shape[-2], shape[-1]
        lim = jnp.sqrt(6.0 / (fan_in + fan_out))
        return jax.random.uniform(k, shape, jnp.float32, -lim, lim)

    return {
        "w1": glorot(k1, (K + 1, num_features, 8)),      # TAGConv(num_features, 8)
        "b1": jax.random.normal(k2, (1, 8), jnp.float32) * 0.01,
        "w2": glorot(k3, (K + 1, 8, 16)),                # TAGConv(8, 16)
        "b2": jax.random.normal(k4, (1, 16), jnp.float32) * 0.01,
        "wfc": glorot(k5, (2 * 16, 2)),                  # Linear(32, 2), stored transposed
        "bfc": jax.random.normal(k6, (1, 2), jnp.float32) * 0.01,
        "num_graphs": num_graphs,
    }


def make_edges(num_graphs, nodes_per_graph):
    src, dst = [], []
    for g in range(num_graphs):
        off = g * nodes_per_graph
        for i in range(nodes_per_graph):
            j = (i + 1) % nodes_per_graph
            # undirected ring: add both directions
            src += [off + i, off + j]
            dst += [off + j, off + i]
    return jnp.array([src, dst], dtype=jnp.int32)


if __name__ == "__main__":
    num_features = 4
    num_graphs = 2
    nodes_per_graph = 8
    num_nodes = num_graphs * nodes_per_graph

    key = jax.random.PRNGKey(0)
    k_x, k_w, k_p = jax.random.split(key, 3)

    x = jax.random.normal(k_x, (num_nodes, num_features), jnp.float32)
    edge_index = make_edges(num_graphs, nodes_per_graph)
    edge_weight = jax.random.uniform(k_w, (edge_index.shape[1],), jnp.float32, 0.5, 1.5)
    batch = jnp.repeat(jnp.arange(num_graphs, dtype=jnp.int32), nodes_per_graph)

    params = init_params(k_p, num_features, num_graphs)

    out = tag_forward(x, edge_index, edge_weight, batch, params)
    out = jax.block_until_ready(out)
    assert out.shape == (num_graphs, 2)
    print("KERNEL_OK")
</pallas_src>

<mosaic_0001>
module attributes {stable_mosaic.version = 11 : i64} {
  func.func @tag_fused_kernel(%arg0: i32, %arg1: memref<16x16xbf16, #tpu.memory_space<vmem>>, %arg2: memref<16x4xf32, #tpu.memory_space<vmem>>, %arg3: memref<16x8xf32, #tpu.memory_space<vmem>>, %arg4: memref<1x8xf32, #tpu.memory_space<vmem>>, %arg5: memref<32x16xf32, #tpu.memory_space<vmem>>, %arg6: memref<1x16xf32, #tpu.memory_space<vmem>>, %arg7: memref<2x16xf32, #tpu.memory_space<vmem>>, %arg8: memref<16x2xf32, #tpu.memory_space<vmem>>, %arg9: memref<2x1xf32, #tpu.memory_space<vmem>>, %arg10: memref<32x2xf32, #tpu.memory_space<vmem>>, %arg11: memref<1x2xf32, #tpu.memory_space<vmem>>, %arg12: memref<2x2xf32, #tpu.memory_space<vmem>>) attributes {dimension_semantics = [#tpu.dimension_semantics<arbitrary>], iteration_bounds = array<i64: 1>, scalar_prefetch = 0 : i64, scratch_operands = 0 : i64, tpu.core_type = #tpu.core_type<tc>, window_params = [{pipeline_mode = #tpu.pipeline_mode<synchronous>, transform_indices = @transform_0, window_bounds = array<i64: 16, 16>}, {pipeline_mode = #tpu.pipeline_mode<synchronous>, transform_indices = @transform_1, window_bounds = array<i64: 16, 4>}, {pipeline_mode = #tpu.pipeline_mode<synchronous>, transform_indices = @transform_2, window_bounds = array<i64: 16, 8>}, {pipeline_mode = #tpu.pipeline_mode<synchronous>, transform_indices = @transform_3, window_bounds = array<i64: 1, 8>}, {pipeline_mode = #tpu.pipeline_mode<synchronous>, transform_indices = @transform_4, window_bounds = array<i64: 32, 16>}, {pipeline_mode = #tpu.pipeline_mode<synchronous>, transform_indices = @transform_5, window_bounds = array<i64: 1, 16>}, {pipeline_mode = #tpu.pipeline_mode<synchronous>, transform_indices = @transform_6, window_bounds = array<i64: 2, 16>}, {pipeline_mode = #tpu.pipeline_mode<synchronous>, transform_indices = @transform_7, window_bounds = array<i64: 16, 2>}, {pipeline_mode = #tpu.pipeline_mode<synchronous>, transform_indices = @transform_8, window_bounds = array<i64: 2, 1>}, {pipeline_mode = #tpu.pipeline_mode<synchronous>, transform_indices = @transform_9, window_bounds = array<i64: 32, 2>}, {pipeline_mode = #tpu.pipeline_mode<synchronous>, transform_indices = @transform_10, window_bounds = array<i64: 1, 2>}, {pipeline_mode = #tpu.pipeline_mode<synchronous>, transform_indices = @transform_11, window_bounds = array<i64: 2, 2>}]} {
    %c0 = arith.constant 0 : index
    %c0_0 = arith.constant 0 : index
    %0 = vector.load %arg1[%c0, %c0_0] : memref<16x16xbf16, #tpu.memory_space<vmem>>, vector<16x16xbf16>
    %c0_1 = arith.constant 0 : index
    %c0_2 = arith.constant 0 : index
    %1 = vector.load %arg2[%c0_1, %c0_2] : memref<16x4xf32, #tpu.memory_space<vmem>>, vector<16x4xf32>
    %2 = arith.truncf %1 : vector<16x4xf32> to vector<16x4xbf16>
    %cst = arith.constant dense<0.000000e+00> : vector<16x4xf32>
    %3 = tpu.matmul %0, %2, %cst {dimension_numbers = #tpu.dot_dimension_numbers<[1], [0], [0], [1], [0, 0, 1, 1], [], []>} : vector<16x16xbf16>, vector<16x4xbf16>, vector<16x4xf32> -> vector<16x4xf32>
    %4 = arith.truncf %3 : vector<16x4xf32> to vector<16x4xbf16>
    %cst_3 = arith.constant dense<0.000000e+00> : vector<16x4xf32>
    %5 = tpu.matmul %0, %4, %cst_3 {dimension_numbers = #tpu.dot_dimension_numbers<[1], [0], [0], [1], [0, 0, 1, 1], [], []>} : vector<16x16xbf16>, vector<16x4xbf16>, vector<16x4xf32> -> vector<16x4xf32>
    %6 = arith.truncf %5 : vector<16x4xf32> to vector<16x4xbf16>
    %cst_4 = arith.constant dense<0.000000e+00> : vector<16x4xf32>
    %7 = tpu.matmul %0, %6, %cst_4 {dimension_numbers = #tpu.dot_dimension_numbers<[1], [0], [0], [1], [0, 0, 1, 1], [], []>} : vector<16x16xbf16>, vector<16x4xbf16>, vector<16x4xf32> -> vector<16x4xf32>
    %8 = tpu.concatenate %1, %3, %5, %7 in 1 : vector<16x4xf32>, vector<16x4xf32>, vector<16x4xf32>, vector<16x4xf32> -> vector<16x16xf32>
    %c0_5 = arith.constant 0 : index
    %c0_6 = arith.constant 0 : index
    %9 = vector.load %arg3[%c0_5, %c0_6] : memref<16x8xf32, #tpu.memory_space<vmem>>, vector<16x8xf32>
    %cst_7 = arith.constant dense<0.000000e+00> : vector<16x8xf32>
    %10 = tpu.matmul %8, %9, %cst_7 {dimension_numbers = #tpu.dot_dimension_numbers<[1], [0], [0], [1], [0, 0, 1, 1], [], []>} : vector<16x16xf32>, vector<16x8xf32>, vector<16x8xf32> -> vector<16x8xf32>
    %c0_8 = arith.constant 0 : index
    %c0_9 = arith.constant 0 : index
    %11 = vector.load %arg4[%c0_8, %c0_9] : memref<1x8xf32, #tpu.memory_space<vmem>>, vector<1x8xf32>
    %12 = vector.broadcast %11 : vector<1x8xf32> to vector<16x8xf32>
    %13 = arith.addf %10, %12 : vector<16x8xf32>
    %cst_10 = arith.constant 0.000000e+00 : f32
    %14 = vector.broadcast %cst_10 : f32 to vector<16x8xf32>
    %15 = arith.maximumf %13, %14 : vector<16x8xf32>
    %16 = arith.truncf %15 : vector<16x8xf32> to vector<16x8xbf16>
    %cst_11 = arith.constant dense<0.000000e+00> : vector<16x8xf32>
    %17 = tpu.matmul %0, %16, %cst_11 {dimension_numbers = #tpu.dot_dimension_numbers<[1], [0], [0], [1], [0, 0, 1, 1], [], []>} : vector<16x16xbf16>, vector<16x8xbf16>, vector<16x8xf32> -> vector<16x8xf32>
    %18 = arith.truncf %17 : vector<16x8xf32> to vector<16x8xbf16>
    %cst_12 = arith.constant dense<0.000000e+00> : vector<16x8xf32>
    %19 = tpu.matmul %0, %18, %cst_12 {dimension_numbers = #tpu.dot_dimension_numbers<[1], [0], [0], [1], [0, 0, 1, 1], [], []>} : vector<16x16xbf16>, vector<16x8xbf16>, vector<16x8xf32> -> vector<16x8xf32>
    %20 = arith.truncf %19 : vector<16x8xf32> to vector<16x8xbf16>
    %cst_13 = arith.constant dense<0.000000e+00> : vector<16x8xf32>
    %21 = tpu.matmul %0, %20, %cst_13 {dimension_numbers = #tpu.dot_dimension_numbers<[1], [0], [0], [1], [0, 0, 1, 1], [], []>} : vector<16x16xbf16>, vector<16x8xbf16>, vector<16x8xf32> -> vector<16x8xf32>
    %22 = tpu.concatenate %15, %17, %19, %21 in 1 : vector<16x8xf32>, vector<16x8xf32>, vector<16x8xf32>, vector<16x8xf32> -> vector<16x32xf32>
    %c0_14 = arith.constant 0 : index
    %c0_15 = arith.constant 0 : index
    %23 = vector.load %arg5[%c0_14, %c0_15] : memref<32x16xf32, #tpu.memory_space<vmem>>, vector<32x16xf32>
    %cst_16 = arith.constant dense<0.000000e+00> : vector<16x16xf32>
    %24 = tpu.matmul %22, %23, %cst_16 {dimension_numbers = #tpu.dot_dimension_numbers<[1], [0], [0], [1], [0, 0, 1, 1], [], []>} : vector<16x32xf32>, vector<32x16xf32>, vector<16x16xf32> -> vector<16x16xf32>
    %c0_17 = arith.constant 0 : index
    %c0_18 = arith.constant 0 : index
    %25 = vector.load %arg6[%c0_17, %c0_18] : memref<1x16xf32, #tpu.memory_space<vmem>>, vector<1x16xf32>
    %26 = vector.broadcast %25 : vector<1x16xf32> to vector<16x16xf32>
    %27 = arith.addf %24, %26 : vector<16x16xf32>
    %cst_19 = arith.constant 0.000000e+00 : f32
    %28 = vector.broadcast %cst_19 : f32 to vector<16x16xf32>
    %29 = arith.maximumf %27, %28 : vector<16x16xf32>
    %c0_20 = arith.constant 0 : index
    %c0_21 = arith.constant 0 : index
    %30 = vector.load %arg7[%c0_20, %c0_21] : memref<2x16xf32, #tpu.memory_space<vmem>>, vector<2x16xf32>
    %cst_22 = arith.constant dense<0.000000e+00> : vector<2x16xf32>
    %31 = tpu.matmul %30, %29, %cst_22 {dimension_numbers = #tpu.dot_dimension_numbers<[1], [0], [0], [1], [0, 0, 1, 1], [], []>} : vector<2x16xf32>, vector<16x16xf32>, vector<2x16xf32> -> vector<2x16xf32>
    %c0_23 = arith.constant 0 : index
    %c0_24 = arith.constant 0 : index
    %32 = vector.load %arg9[%c0_23, %c0_24] : memref<2x1xf32, #tpu.memory_space<vmem>>, vector<2x1xf32>
    %33 = vector.broadcast %32 : vector<2x1xf32> to vector<2x16xf32>
    %34 = arith.mulf %31, %33 : vector<2x16xf32>
    %c0_25 = arith.constant 0 : index
    %c0_26 = arith.constant 0 : index
    %35 = vector.load %arg8[%c0_25, %c0_26] : memref<16x2xf32, #tpu.memory_space<vmem>>, vector<16x2xf32>
    %36 = vector.extract_strided_slice %35 {offsets = [0, 0], sizes = [16, 1], strides = [1, 1]} : vector<16x2xf32> to vector<16x1xf32>
    %cst_27 = arith.constant 0.000000e+00 : f32
    %37 = vector.broadcast %cst_27 : f32 to vector<16x1xf32>
    %38 = arith.cmpf ogt, %36, %37 : vector<16x1xf32>
    %cst_28 = arith.constant -1.000000e+30 : f32
    %39 = vector.shape_cast %38 : vector<16x1xi1> to vector<16x1xi1>
    %40 = vector.broadcast %39 : vector<16x1xi1> to vector<16x16xi1>
    %41 = vector.broadcast %cst_28 : f32 to vector<16x16xf32>
    %42 = arith.select %40, %29, %41 : vector<16x16xi1>, vector<16x16xf32>
    %cst_29 = arith.constant dense<0xFF800000> : vector<16xf32>
    %43 = vector.multi_reduction <maximumf>, %42, %cst_29 [0] : vector<16x16xf32> to vector<16xf32>
    %44 = vector.shape_cast %43 : vector<16xf32> to vector<1x16xf32>
    %45 = vector.extract_strided_slice %35 {offsets = [0, 1], sizes = [16, 1], strides = [1, 1]} : vector<16x2xf32> to vector<16x1xf32>
    %cst_30 = arith.constant 0.000000e+00 : f32
    %46 = vector.broadcast %cst_30 : f32 to vector<16x1xf32>
    %47 = arith.cmpf ogt, %45, %46 : vector<16x1xf32>
    %cst_31 = arith.constant -1.000000e+30 : f32
    %48 = vector.shape_cast %47 : vector<16x1xi1> to vector<16x1xi1>
    %49 = vector.broadcast %48 : vector<16x1xi1> to vector<16x16xi1>
    %50 = vector.broadcast %cst_31 : f32 to vector<16x16xf32>
    %51 = arith.select %49, %29, %50 : vector<16x16xi1>, vector<16x16xf32>
    %cst_32 = arith.constant dense<0xFF800000> : vector<16xf32>
    %52 = vector.multi_reduction <maximumf>, %51, %cst_32 [0] : vector<16x16xf32> to vector<16xf32>
    %53 = vector.shape_cast %52 : vector<16xf32> to vector<1x16xf32>
    %54 = tpu.concatenate %44, %53 in 0 : vector<1x16xf32>, vector<1x16xf32> -> vector<2x16xf32>
    %55 = tpu.concatenate %54, %34 in 1 : vector<2x16xf32>, vector<2x16xf32> -> vector<2x32xf32>
    %c0_33 = arith.constant 0 : index
    %c0_34 = arith.constant 0 : index
    %56 = vector.load %arg10[%c0_33, %c0_34] : memref<32x2xf32, #tpu.memory_space<vmem>>, vector<32x2xf32>
    %cst_35 = arith.constant dense<0.000000e+00> : vector<2x2xf32>
    %57 = tpu.matmul %55, %56, %cst_35 {dimension_numbers = #tpu.dot_dimension_numbers<[1], [0], [0], [1], [0, 0, 1, 1], [], []>} : vector<2x32xf32>, vector<32x2xf32>, vector<2x2xf32> -> vector<2x2xf32>
    %c0_36 = arith.constant 0 : index
    %c0_37 = arith.constant 0 : index
    %58 = vector.load %arg11[%c0_36, %c0_37] : memref<1x2xf32, #tpu.memory_space<vmem>>, vector<1x2xf32>
    %59 = vector.broadcast %58 : vector<1x2xf32> to vector<2x2xf32>
    %60 = arith.addf %57, %59 : vector<2x2xf32>
    %c0_38 = arith.constant 0 : index
    %c0_39 = arith.constant 0 : index
    %61 = vector.load %arg12[%c0_38, %c0_39] : memref<2x2xf32, #tpu.memory_space<vmem>>, vector<2x2xf32>
    tpu.vector_store %arg12[%c0_38, %c0_39], %60 {strides = array<i32>} : memref<2x2xf32, #tpu.memory_space<vmem>>, vector<2x2xf32>,
    return
  }
  func.func @transform_0(%arg0: i32) -> (i32, i32) {
    %c0_i32 = arith.constant 0 : i32
    %c0_i32_0 = arith.constant 0 : i32
    %c0_i32_1 = arith.constant 0 : i32
    return %c0_i32, %c0_i32_0 : i32, i32
  }
  func.func @transform_1(%arg0: i32) -> (i32, i32) {
    %c0_i32 = arith.constant 0 : i32
    %c0_i32_0 = arith.constant 0 : i32
    %c0_i32_1 = arith.constant 0 : i32
    return %c0_i32, %c0_i32_0 : i32, i32
  }
  func.func @transform_2(%arg0: i32) -> (i32, i32) {
    %c0_i32 = arith.constant 0 : i32
    %c0_i32_0 = arith.constant 0 : i32
    %c0_i32_1 = arith.constant 0 : i32
    return %c0_i32, %c0_i32_0 : i32, i32
  }
  func.func @transform_3(%arg0: i32) -> (i32, i32) {
    %c0_i32 = arith.constant 0 : i32
    %c0_i32_0 = arith.constant 0 : i32
    %c0_i32_1 = arith.constant 0 : i32
    return %c0_i32, %c0_i32_0 : i32, i32
  }
  func.func @transform_4(%arg0: i32) -> (i32, i32) {
    %c0_i32 = arith.constant 0 : i32
    %c0_i32_0 = arith.constant 0 : i32
    %c0_i32_1 = arith.constant 0 : i32
    return %c0_i32, %c0_i32_0 : i32, i32
  }
  func.func @transform_5(%arg0: i32) -> (i32, i32) {
    %c0_i32 = arith.constant 0 : i32
    %c0_i32_0 = arith.constant 0 : i32
    %c0_i32_1 = arith.constant 0 : i32
    return %c0_i32, %c0_i32_0 : i32, i32
  }
  func.func @transform_6(%arg0: i32) -> (i32, i32) {
    %c0_i32 = arith.constant 0 : i32
    %c0_i32_0 = arith.constant 0 : i32
    %c0_i32_1 = arith.constant 0 : i32
    return %c0_i32, %c0_i32_0 : i32, i32
  }
  func.func @transform_7(%arg0: i32) -> (i32, i32) {
    %c0_i32 = arith.constant 0 : i32
    %c0_i32_0 = arith.constant 0 : i32
    %c0_i32_1 = arith.constant 0 : i32
    return %c0_i32, %c0_i32_0 : i32, i32
  }
  func.func @transform_8(%arg0: i32) -> (i32, i32) {
    %c0_i32 = arith.constant 0 : i32
    %c0_i32_0 = arith.constant 0 : i32
    %c0_i32_1 = arith.constant 0 : i32
    return %c0_i32, %c0_i32_0 : i32, i32
  }
  func.func @transform_9(%arg0: i32) -> (i32, i32) {
    %c0_i32 = arith.constant 0 : i32
    %c0_i32_0 = arith.constant 0 : i32
    %c0_i32_1 = arith.constant 0 : i32
    return %c0_i32, %c0_i32_0 : i32, i32
  }
  func.func @transform_10(%arg0: i32) -> (i32, i32) {
    %c0_i32 = arith.constant 0 : i32
    %c0_i32_0 = arith.constant 0 : i32
    %c0_i32_1 = arith.constant 0 : i32
    return %c0_i32, %c0_i32_0 : i32, i32
  }
  func.func @transform_11(%arg0: i32) -> (i32, i32) {
    %c0_i32 = arith.constant 0 : i32
    %c0_i32_0 = arith.constant 0 : i32
    %c0_i32_1 = arith.constant 0 : i32
    return %c0_i32, %c0_i32_0 : i32, i32
  }
}

</mosaic_0001>

<llo_original>
// kernel: tpu_custom_call.1
$region0: #{tpu_custom_call.1}
  #allocation0 [shape = 'u32[]', space=smem, size = 0x4, offset = 0x4, fixed_abs, tag = 'smem constant byte address 0x4 - core index']
  #allocation1 [shape = 'u32[144,128]{1,0:T(1,128)}', space=vmem, size = 0x12000, scoped, tag = 'internal scratch']
  %s0 = inlined_call_operand.vmem [shape: bf16[16,16], index: 0, kind: input, shape index: {}]
  %s1 = inlined_call_operand.vmem [shape: f32[16,4], index: 1, kind: input, shape index: {}]
  %s2 = inlined_call_operand.vmem [shape: f32[16,8], index: 2, kind: input, shape index: {}]
  %s3 = inlined_call_operand.vmem [shape: f32[1,8], index: 3, kind: input, shape index: {}]
  %s4 = inlined_call_operand.vmem [shape: f32[32,16], index: 4, kind: input, shape index: {}]
  %s5 = inlined_call_operand.vmem [shape: f32[1,16], index: 5, kind: input, shape index: {}]
  %s6 = inlined_call_operand.vmem [shape: f32[2,16], index: 6, kind: input, shape index: {}]
  %s7 = inlined_call_operand.vmem [shape: f32[16,2], index: 7, kind: input, shape index: {}]
  %s8 = inlined_call_operand.vmem [shape: f32[2,1], index: 8, kind: input, shape index: {}]
  %s9 = inlined_call_operand.vmem [shape: f32[32,2], index: 9, kind: input, shape index: {}]
  %s10 = inlined_call_operand.vmem [shape: f32[1,2], index: 10, kind: input, shape index: {}]
  %s11 = inlined_call_operand.hbm [shape: f32[2,2], index: 11, kind: output, shape index: {}]
  %s12 = sld [smem:[#allocation0]]
  $region54: #{tpu_custom_call.1} parent=0
    _
  %s14 = ssub.s32 1, %s12
  %s15 = scalar_select 0, %s14, %s12
  $region1: #{tpu_custom_call.1} parent=0
    #allocation2 [shape = 'u8[1024]{0}', space=vmem, size = 0x400, scoped, tag = 'output window, operand 0, single buffered']
    #allocation3 [shape = 's32[1]{0}', space=sflag, size = 0x4, scoped, tag = 'scoped memory for tpu_custom_call.1']
    %16 = vsyncpa [#allocation3], 0
    // Predicated region
    $region2: #{tpu_custom_call.1} parent=1 // pred_check
      _
    $region3: #{tpu_custom_call.1} parent=1 // pred_check_branch
      %18 = sbr.rel (0) target = $region5
    $region4: #{tpu_custom_call.1} parent=1 // pred_region
      _
    $region5: #{tpu_custom_call.1} parent=1 // pred_fallthru
      _
    // Predicated region
    $region6: #{tpu_custom_call.1} parent=1 // pred_check
      _
    $region7: #{tpu_custom_call.1} parent=1 // pred_check_branch
      %20 = sbr.rel (0) target = $region9
    $region8: #{tpu_custom_call.1} parent=1 // pred_region
      _
    $region9: #{tpu_custom_call.1} parent=1 // pred_fallthru
      _
    // Predicated region
    $region10: #{tpu_custom_call.1} parent=1 // pred_check
      _
    $region11: #{tpu_custom_call.1} parent=1 // pred_check_branch
      %22 = sbr.rel (0) target = $region13
    $region12: #{tpu_custom_call.1} parent=1 // pred_region
      _
    $region13: #{tpu_custom_call.1} parent=1 // pred_fallthru
      _
    // Predicated region
    $region14: #{tpu_custom_call.1} parent=1 // pred_check
      _
    $region15: #{tpu_custom_call.1} parent=1 // pred_check_branch
      %24 = sbr.rel (0) target = $region17
    $region16: #{tpu_custom_call.1} parent=1 // pred_region
      _
    $region17: #{tpu_custom_call.1} parent=1 // pred_fallthru
      _
    // Predicated region
    $region18: #{tpu_custom_call.1} parent=1 // pred_check
      _
    $region19: #{tpu_custom_call.1} parent=1 // pred_check_branch
      %26 = sbr.rel (0) target = $region21
    $region20: #{tpu_custom_call.1} parent=1 // pred_region
      _
    $region21: #{tpu_custom_call.1} parent=1 // pred_fallthru
      _
    // Predicated region
    $region22: #{tpu_custom_call.1} parent=1 // pred_check
      _
    $region23: #{tpu_custom_call.1} parent=1 // pred_check_branch
      %28 = sbr.rel (0) target = $region25
    $region24: #{tpu_custom_call.1} parent=1 // pred_region
      _
    $region25: #{tpu_custom_call.1} parent=1 // pred_fallthru
      _
    // Predicated region
    $region26: #{tpu_custom_call.1} parent=1 // pred_check
      _
    $region27: #{tpu_custom_call.1} parent=1 // pred_check_branch
      %30 = sbr.rel (0) target = $region29
    $region28: #{tpu_custom_call.1} parent=1 // pred_region
      _
    $region29: #{tpu_custom_call.1} parent=1 // pred_fallthru
      _
    // Predicated region
    $region30: #{tpu_custom_call.1} parent=1 // pred_check
      _
    $region31: #{tpu_custom_call.1} parent=1 // pred_check_branch
      %32 = sbr.rel (0) target = $region33
    $region32: #{tpu_custom_call.1} parent=1 // pred_region
      _
    $region33: #{tpu_custom_call.1} parent=1 // pred_fallthru
      _
    // Predicated region
    $region34: #{tpu_custom_call.1} parent=1 // pred_check
      _
    $region35: #{tpu_custom_call.1} parent=1 // pred_check_branch
      %34 = sbr.rel (0) target = $region37
    $region36: #{tpu_custom_call.1} parent=1 // pred_region
      _
    $region37: #{tpu_custom_call.1} parent=1 // pred_fallthru
      _
    // Predicated region
    $region38: #{tpu_custom_call.1} parent=1 // pred_check
      _
    $region39: #{tpu_custom_call.1} parent=1 // pred_check_branch
      %36 = sbr.rel (0) target = $region41
    $region40: #{tpu_custom_call.1} parent=1 // pred_region
      _
    $region41: #{tpu_custom_call.1} parent=1 // pred_fallthru
      _
    // Predicated region
    $region42: #{tpu_custom_call.1} parent=1 // pred_check
      _
    $region43: #{tpu_custom_call.1} parent=1 // pred_check_branch
      %38 = sbr.rel (0) target = $region45
    $region44: #{tpu_custom_call.1} parent=1 // pred_region
      _
    $region45: #{tpu_custom_call.1} parent=1 // pred_fallthru
      _
    %v40 = vld [vmem:[%s0] sm:$0xf]
    %v41 = vld [vmem:[%s0 + $0x4] sm:$0xf]
    %v42 = vld [vmem:[%s1] sm:$0xff]
    %v43 = vld [vmem:[%s1 + $0x8] sm:$0xff]
    %v44 = vpack.c.bf16 %v43, %v42
    %v47 = vunpack.c.l.b16 %v40
    %v48 = vunpack.c.l.b16 %v41
    %v49 = vpack.c.b16 %v48, %v47
    %vm50 = vcmask 130048
    %v52 = vsel %vm50, %v49, 0
    %54 = vmatprep.subr.bf16.mxu0 0
    %55 = vmatpush1.bf16.msra.mxu0 %v44
    %56 = vmatprep.subr.bf16.mxu0 0
    %57 = vmatpush1.bf16.msra.mxu0 0
    %58 = vmatprep.subr.bf16.mxu0 0
    %59 = vmatpush1.bf16.msra.mxu0 0
    %60 = vmatprep.subr.bf16.mxu0 0
    %61 = vmatpush1.bf16.msra.mxu0 0
    %62 = vmatprep.subr.bf16.mxu0 0
    %63 = vmatpush1.bf16.msra.mxu0 0
    %64 = vmatprep.subr.bf16.mxu0 0
    %65 = vmatpush1.bf16.msra.mxu0 0
    %66 = vmatprep.subr.bf16.mxu0 0
    %67 = vmatpush1.bf16.msra.mxu0 0
    %68 = vmatprep.subr.bf16.mxu0 0
    %69 = vmatpush1.bf16.msra.mxu0 0
    %70 = vmatprep.subr.bf16.mxu0 0
    %71 = vmatpush1.bf16.msra.mxu0 0
    %72 = vmatprep.subr.bf16.mxu0 0
    %73 = vmatpush1.bf16.msra.mxu0 0
    %74 = vmatprep.subr.bf16.mxu0 0
    %75 = vmatpush1.bf16.msra.mxu0 0
    %76 = vmatprep.subr.bf16.mxu0 0
    %77 = vmatpush1.bf16.msra.mxu0 0
    %78 = vmatprep.subr.bf16.mxu0 0
    %79 = vmatpush1.bf16.msra.mxu0 0
    %80 = vmatprep.subr.bf16.mxu0 0
    %81 = vmatpush1.bf16.msra.mxu0 0
    %82 = vmatprep.subr.bf16.mxu0 0
    %83 = vmatpush1.bf16.msra.mxu0 0
    %84 = vmatprep.subr.bf16.mxu0 0
    %85 = vmatpush1.bf16.msra.mxu0 0
    %86 = vmatprep.mubr.bf16.mxu0 0
    %87 = vmatmul.mubr.bf16.gmra.mrb[0].mxu0 %v52
    %v88 = vpop.f32.mrb[0].mxu0
    %v89 = vadd.f32 0.0, %v88
    %v90 = vpop.f32.mrb[0].mxu0
    %v91 = vpop.f32.mrb[0].mxu0
    %v92 = vadd.f32 0.0, %v91
    %v93 = vpop.f32.mrb[0].mxu0
    %94 = vdwg.mxu0
    %v95 = vpack.c.bf16 %v92, %v89
    %96 = vmatprep.subr.bf16.mxu0 0
    %97 = vmatpush1.bf16.msra.mxu0 %v95
    %98 = vmatprep.subr.bf16.mxu0 0
    %99 = vmatpush1.bf16.msra.mxu0 0
    %100 = vmatprep.subr.bf16.mxu0 0
    %101 = vmatpush1.bf16.msra.mxu0 0
    %102 = vmatprep.subr.bf16.mxu0 0
    %103 = vmatpush1.bf16.msra.mxu0 0
    %104 = vmatprep.subr.bf16.mxu0 0
    %105 = vmatpush1.bf16.msra.mxu0 0
    %106 = vmatprep.subr.bf16.mxu0 0
    %107 = vmatpush1.bf16.msra.mxu0 0
    %108 = vmatprep.subr.bf16.mxu0 0
    %109 = vmatpush1.bf16.msra.mxu0 0
    %110 = vmatprep.subr.bf16.mxu0 0
    %111 = vmatpush1.bf16.msra.mxu0 0
    %112 = vmatprep.subr.bf16.mxu0 0
    %113 = vmatpush1.bf16.msra.mxu0 0
    %114 = vmatprep.subr.bf16.mxu0 0
    %115 = vmatpush1.bf16.msra.mxu0 0
    %116 = vmatprep.subr.bf16.mxu0 0
    %117 = vmatpush1.bf16.msra.mxu0 0
    %118 = vmatprep.subr.bf16.mxu0 0
    %119 = vmatpush1.bf16.msra.mxu0 0
    %120 = vmatprep.subr.bf16.mxu0 0
    %121 = vmatpush1.bf16.msra.mxu0 0
    %122 = vmatprep.subr.bf16.mxu0 0
    %123 = vmatpush1.bf16.msra.mxu0 0
    %124 = vmatprep.subr.bf16.mxu0 0
    %125 = vmatpush1.bf16.msra.mxu0 0
    %126 = vmatprep.subr.bf16.mxu0 0
    %127 = vmatpush1.bf16.msra.mxu0 0
    %128 = vmatprep.mubr.bf16.mxu0 0
    %129 = vmatmul.mubr.bf16.gmra.mrb[0].mxu0 %v52
    %v130 = vpop.f32.mrb[0].mxu0
    %v131 = vadd.f32 0.0, %v130
    %v132 = vpop.f32.mrb[0].mxu0
    %v133 = vpop.f32.mrb[0].mxu0
    %v134 = vadd.f32 0.0, %v133
    %v135 = vpop.f32.mrb[0].mxu0
    %136 = vdwg.mxu0
    %v137 = vpack.c.bf16 %v134, %v131
    %138 = vmatprep.subr.bf16.mxu0 0
    %139 = vmatpush1.bf16.msra.mxu0 %v137
    %140 = vmatprep.subr.bf16.mxu0 0
    %141 = vmatpush1.bf16.msra.mxu0 0
    %142 = vmatprep.subr.bf16.mxu0 0
    %143 = vmatpush1.bf16.msra.mxu0 0
    %144 = vmatprep.subr.bf16.mxu0 0
    %145 = vmatpush1.bf16.msra.mxu0 0
    %146 = vmatprep.subr.bf16.mxu0 0
    %147 = vmatpush1.bf16.msra.mxu0 0
    %148 = vmatprep.subr.bf16.mxu0 0
    %149 = vmatpush1.bf16.msra.mxu0 0
    %150 = vmatprep.subr.bf16.mxu0 0
    %151 = vmatpush1.bf16.msra.mxu0 0
    %152 = vmatprep.subr.bf16.mxu0 0
    %153 = vmatpush1.bf16.msra.mxu0 0
    %154 = vmatprep.subr.bf16.mxu0 0
    %155 = vmatpush1.bf16.msra.mxu0 0
    %156 = vmatprep.subr.bf16.mxu0 0
    %157 = vmatpush1.bf16.msra.mxu0 0
    %158 = vmatprep.subr.bf16.mxu0 0
    %159 = vmatpush1.bf16.msra.mxu0 0
    %160 = vmatprep.subr.bf16.mxu0 0
    %161 = vmatpush1.bf16.msra.mxu0 0
    %162 = vmatprep.subr.bf16.mxu0 0
    %163 = vmatpush1.bf16.msra.mxu0 0
    %164 = vmatprep.subr.bf16.mxu0 0
    %165 = vmatpush1.bf16.msra.mxu0 0
    %166 = vmatprep.subr.bf16.mxu0 0
    %167 = vmatpush1.bf16.msra.mxu0 0
    %168 = vmatprep.subr.bf16.mxu0 0
    %169 = vmatpush1.bf16.msra.mxu0 0
    %170 = vmatprep.mubr.bf16.mxu0 0
    %171 = vmatmul.mubr.bf16.gmra.mrb[0].mxu0 %v52
    %v172 = vpop.f32.mrb[0].mxu0
    %v173 = vadd.f32 0.0, %v172
    %v174 = vpop.f32.mrb[0].mxu0
    %v175 = vpop.f32.mrb[0].mxu0
    %v176 = vadd.f32 0.0, %v175
    %v177 = vpop.f32.mrb[0].mxu0
    %178 = vdwg.mxu0
    %181 = vrot.lane.b32.xlu0 %v89, 4
    %v182 = vpop.permute.xlu0 %181
    %183 = vrot.lane.b32.xlu0 %v92, 4
    %v184 = vpop.permute.xlu0 %183
    %189 = vrot.lane.b32.xlu0 %v131, 8
    %v190 = vpop.permute.xlu0 %189
    %191 = vrot.lane.b32.xlu0 %v134, 8
    %v192 = vpop.permute.xlu0 %191
    %197 = vrot.lane.b32.xlu0 %v173, 12
    %v198 = vpop.permute.xlu0 %197
    %199 = vrot.lane.b32.xlu0 %v176, 12
    %v200 = vpop.permute.xlu0 %199
    %vm203 = vcmask 31744
    %v204 = vsel %vm203, %v42, %v182
    %v205 = vsel %vm203, %v43, %v184
    %vm206 = vcmask 64512
    %v207 = vsel %vm206, %v204, %v190
    %v208 = vsel %vm206, %v205, %v192
    %vm209 = vcmask 97280
    %v210 = vsel %vm209, %v207, %v198
    %v211 = vsel %vm209, %v208, %v200
    %v212 = vld [vmem:[%s2] sm:$0xff]
    %v213 = vld [vmem:[%s2 + $0x8] sm:$0xff]
    %v214 = vld [vmem:[%s3] sm:$0x1]
    %v216 = vlaneseq
    %v217 = vshrl.u32 %v216, 7
    %v218 = vsub.s32 0, %v217
    %v219 = vrot.slane %v214, %v218
    %v222 = vsel %vm50, %v210, 0
    %v225 = vsel %vm50, %v211, 0
    %227 = vmatprep.subr.mxu0 0.0
    %228 = vmatpush1.msra.mxu0 %v212
    %229 = vmatprep.subr.mxu0 0.0
    %230 = vmatpush1.msra.mxu0 %v213
    %231 = vmatprep.subr.mxu0 0.0
    %232 = vmatpush1.msra.mxu0 0.0
    %233 = vmatprep.subr.mxu0 0.0
    %234 = vmatpush1.msra.mxu0 0.0
    %235 = vmatprep.subr.mxu0 0.0
    %236 = vmatpush1.msra.mxu0 0.0
    %237 = vmatprep.subr.mxu0 0.0
    %238 = vmatpush1.msra.mxu0 0.0
    %239 = vmatprep.subr.mxu0 0.0
    %240 = vmatpush1.msra.mxu0 0.0
    %241 = vmatprep.subr.mxu0 0.0
    %242 = vmatpush1.msra.mxu0 0.0
    %243 = vmatprep.subr.mxu0 0.0
    %244 = vmatpush1.msra.mxu0 0.0
    %245 = vmatprep.subr.mxu0 0.0
    %246 = vmatpush1.msra.mxu0 0.0
    %247 = vmatprep.subr.mxu0 0.0
    %248 = vmatpush1.msra.mxu0 0.0
    %249 = vmatprep.subr.mxu0 0.0
    %250 = vmatpush1.msra.mxu0 0.0
    %251 = vmatprep.subr.mxu0 0.0
    %252 = vmatpush1.msra.mxu0 0.0
    %253 = vmatprep.subr.mxu0 0.0
    %254 = vmatpush1.msra.mxu0 0.0
    %255 = vmatprep.subr.mxu0 0.0
    %256 = vmatpush1.msra.mxu0 0.0
    %257 = vmatprep.subr.mxu0 0.0
    %258 = vmatpush1.msra.mxu0 0.0
    %259 = vmatprep.subr.mxu0 0.0
    %260 = vmatpush1.msra.mxu0 0.0
    %261 = vmatprep.subr.mxu0 0.0
    %262 = vmatpush1.msra.mxu0 0.0
    %263 = vmatprep.subr.mxu0 0.0
    %264 = vmatpush1.msra.mxu0 0.0
    %265 = vmatprep.subr.mxu0 0.0
    %266 = vmatpush1.msra.mxu0 0.0
    %267 = vmatprep.subr.mxu0 0.0
    %268 = vmatpush1.msra.mxu0 0.0
    %269 = vmatprep.subr.mxu0 0.0
    %270 = vmatpush1.msra.mxu0 0.0
    %271 = vmatprep.subr.mxu0 0.0
    %272 = vmatpush1.msra.mxu0 0.0
    %273 = vmatprep.subr.mxu0 0.0
    %274 = vmatpush1.msra.mxu0 0.0
    %275 = vmatprep.subr.mxu0 0.0
    %276 = vmatpush1.msra.mxu0 0.0
    %277 = vmatprep.subr.mxu0 0.0
    %278 = vmatpush1.msra.mxu0 0.0
    %279 = vmatprep.subr.mxu0 0.0
    %280 = vmatpush1.msra.mxu0 0.0
    %281 = vmatprep.subr.mxu0 0.0
    %282 = vmatpush1.msra.mxu0 0.0
    %283 = vmatprep.subr.mxu0 0.0
    %284 = vmatpush1.msra.mxu0 0.0
    %285 = vmatprep.subr.mxu0 0.0
    %286 = vmatpush1.msra.mxu0 0.0
    %287 = vmatprep.subr.mxu0 0.0
    %288 = vmatpush1.msra.mxu0 0.0
    %289 = vmatprep.subr.mxu0 0.0
    %290 = vmatpush1.msra.mxu0 0.0
    %291 = vmatprep.mubr.f32.mxu0 0.0
    %292 = vmatmul.mubr.f32.gmra.mrb[0].mxu0 %v222
    %v293 = vpop.f32.mrb[0].mxu0
    %v294 = vadd.f32 %v219, %v293
    %v295 = vpop.f32.mrb[0].mxu0
    %296 = vmatprep.mubr.f32.mxu0 0.0
    %297 = vmatmul.mubr.f32.gmra.mrb[0].mxu0 %v225
    %v298 = vpop.f32.mrb[0].mxu0
    %v299 = vadd.f32 %v219, %v298
    %v300 = vpop.f32.mrb[0].mxu0
    %301 = vdwg.mxu0
    %v302 = vmax.f32 %v294, 0.0
    %v303 = vmax.f32 %v299, 0.0
    %v304 = vpack.c.bf16 %v303, %v302
    %305 = vmatprep.subr.bf16.mxu0 0
    %306 = vmatpush1.bf16.msra.mxu0 %v304
    %307 = vmatprep.subr.bf16.mxu0 0
    %308 = vmatpush1.bf16.msra.mxu0 0
    %309 = vmatprep.subr.bf16.mxu0 0
    %310 = vmatpush1.bf16.msra.mxu0 0
    %311 = vmatprep.subr.bf16.mxu0 0
    %312 = vmatpush1.bf16.msra.mxu0 0
    %313 = vmatprep.subr.bf16.mxu0 0
    %314 = vmatpush1.bf16.msra.mxu0 0
    %315 = vmatprep.subr.bf16.mxu0 0
    %316 = vmatpush1.bf16.msra.mxu0 0
    %317 = vmatprep.subr.bf16.mxu0 0
    %318 = vmatpush1.bf16.msra.mxu0 0
    %319 = vmatprep.subr.bf16.mxu0 0
    %320 = vmatpush1.bf16.msra.mxu0 0
    %321 = vmatprep.subr.bf16.mxu0 0
    %322 = vmatpush1.bf16.msra.mxu0 0
    %323 = vmatprep.subr.bf16.mxu0 0
    %324 = vmatpush1.bf16.msra.mxu0 0
    %325 = vmatprep.subr.bf16.mxu0 0
    %326 = vmatpush1.bf16.msra.mxu0 0
    %327 = vmatprep.subr.bf16.mxu0 0
    %328 = vmatpush1.bf16.msra.mxu0 0
    %329 = vmatprep.subr.bf16.mxu0 0
    %330 = vmatpush1.bf16.msra.mxu0 0
    %331 = vmatprep.subr.bf16.mxu0 0
    %332 = vmatpush1.bf16.msra.mxu0 0
    %333 = vmatprep.subr.bf16.mxu0 0
    %334 = vmatpush1.bf16.msra.mxu0 0
    %335 = vmatprep.subr.bf16.mxu0 0
    %336 = vmatpush1.bf16.msra.mxu0 0
    %337 = vmatprep.mubr.bf16.mxu0 0
    %338 = vmatmul.mubr.bf16.gmra.mrb[0].mxu0 %v52
    %v339 = vpop.f32.mrb[0].mxu0
    %v340 = vadd.f32 0.0, %v339
    %v341 = vpop.f32.mrb[0].mxu0
    %v342 = vpop.f32.mrb[0].mxu0
    %v343 = vadd.f32 0.0, %v342
    %v344 = vpop.f32.mrb[0].mxu0
    %345 = vdwg.mxu0
    %v346 = vpack.c.bf16 %v343, %v340
    %347 = vmatprep.subr.bf16.mxu0 0
    %348 = vmatpush1.bf16.msra.mxu0 %v346
    %349 = vmatprep.subr.bf16.mxu0 0
    %350 = vmatpush1.bf16.msra.mxu0 0
    %351 = vmatprep.subr.bf16.mxu0 0
    %352 = vmatpush1.bf16.msra.mxu0 0
    %353 = vmatprep.subr.bf16.mxu0 0
    %354 = vmatpush1.bf16.msra.mxu0 0
    %355 = vmatprep.subr.bf16.mxu0 0
    %356 = vmatpush1.bf16.msra.mxu0 0
    %357 = vmatprep.subr.bf16.mxu0 0
    %358 = vmatpush1.bf16.msra.mxu0 0
    %359 = vmatprep.subr.bf16.mxu0 0
    %360 = vmatpush1.bf16.msra.mxu0 0
    %361 = vmatprep.subr.bf16.mxu0 0
    %362 = vmatpush1.bf16.msra.mxu0 0
    %363 = vmatprep.subr.bf16.mxu0 0
    %364 = vmatpush1.bf16.msra.mxu0 0
    %365 = vmatprep.subr.bf16.mxu0 0
    %366 = vmatpush1.bf16.msra.mxu0 0
    %367 = vmatprep.subr.bf16.mxu0 0
    %368 = vmatpush1.bf16.msra.mxu0 0
    %369 = vmatprep.subr.bf16.mxu0 0
    %370 = vmatpush1.bf16.msra.mxu0 0
    %371 = vmatprep.subr.bf16.mxu0 0
    %372 = vmatpush1.bf16.msra.mxu0 0
    %373 = vmatprep.subr.bf16.mxu0 0
    %374 = vmatpush1.bf16.msra.mxu0 0
    %375 = vmatprep.subr.bf16.mxu0 0
    %376 = vmatpush1.bf16.msra.mxu0 0
    %377 = vmatprep.subr.bf16.mxu0 0
    %378 = vmatpush1.bf16.msra.mxu0 0
    %379 = vmatprep.mubr.bf16.mxu0 0
    %380 = vmatmul.mubr.bf16.gmra.mrb[0].mxu0 %v52
    %v381 = vpop.f32.mrb[0].mxu0
    %v382 = vadd.f32 0.0, %v381
    %v383 = vpop.f32.mrb[0].mxu0
    %v384 = vpop.f32.mrb[0].mxu0
    %v385 = vadd.f32 0.0, %v384
    %v386 = vpop.f32.mrb[0].mxu0
    %387 = vdwg.mxu0
    %v388 = vpack.c.bf16 %v385, %v382
    %389 = vmatprep.subr.bf16.mxu0 0
    %390 = vmatpush1.bf16.msra.mxu0 %v388
    %391 = vmatprep.subr.bf16.mxu0 0
    %392 = vmatpush1.bf16.msra.mxu0 0
    %393 = vmatprep.subr.bf16.mxu0 0
    %394 = vmatpush1.bf16.msra.mxu0 0
    %395 = vmatprep.subr.bf16.mxu0 0
    %396 = vmatpush1.bf16.msra.mxu0 0
    %397 = vmatprep.subr.bf16.mxu0 0
    %398 = vmatpush1.bf16.msra.mxu0 0
    %399 = vmatprep.subr.bf16.mxu0 0
    %400 = vmatpush1.bf16.msra.mxu0 0
    %401 = vmatprep.subr.bf16.mxu0 0
    %402 = vmatpush1.bf16.msra.mxu0 0
    %403 = vmatprep.subr.bf16.mxu0 0
    %404 = vmatpush1.bf16.msra.mxu0 0
    %405 = vmatprep.subr.bf16.mxu0 0
    %406 = vmatpush1.bf16.msra.mxu0 0
    %407 = vmatprep.subr.bf16.mxu0 0
    %408 = vmatpush1.bf16.msra.mxu0 0
    %409 = vmatprep.subr.bf16.mxu0 0
    %410 = vmatpush1.bf16.msra.mxu0 0
    %411 = vmatprep.subr.bf16.mxu0 0
    %412 = vmatpush1.bf16.msra.mxu0 0
    %413 = vmatprep.subr.bf16.mxu0 0
    %414 = vmatpush1.bf16.msra.mxu0 0
    %415 = vmatprep.subr.bf16.mxu0 0
    %416 = vmatpush1.bf16.msra.mxu0 0
    %417 = vmatprep.subr.bf16.mxu0 0
    %418 = vmatpush1.bf16.msra.mxu0 0
    %419 = vmatprep.subr.bf16.mxu0 0
    %420 = vmatpush1.bf16.msra.mxu0 0
    %421 = vmatprep.mubr.bf16.mxu0 0
    %422 = vmatmul.mubr.bf16.gmra.mrb[0].mxu0 %v52
    %v423 = vpop.f32.mrb[0].mxu0
    %v424 = vadd.f32 0.0, %v423
    %v425 = vpop.f32.mrb[0].mxu0
    %v426 = vpop.f32.mrb[0].mxu0
    %v427 = vadd.f32 0.0, %v426
    %v428 = vpop.f32.mrb[0].mxu0
    %429 = vdwg.mxu0
    %432 = vrot.lane.b32.xlu0 %v340, 8
    %v433 = vpop.permute.xlu0 %432
    %434 = vrot.lane.b32.xlu0 %v343, 8
    %v435 = vpop.permute.xlu0 %434
    %440 = vrot.lane.b32.xlu0 %v382, 16
    %v441 = vpop.permute.xlu0 %440
    %442 = vrot.lane.b32.xlu0 %v385, 16
    %v443 = vpop.permute.xlu0 %442
    %448 = vrot.lane.b32.xlu0 %v424, 24
    %v449 = vpop.permute.xlu0 %448
    %450 = vrot.lane.b32.xlu0 %v427, 24
    %v451 = vpop.permute.xlu0 %450
    %v454 = vsel %vm206, %v302, %v433
    %v455 = vsel %vm206, %v303, %v435
    %v456 = vsel %vm50, %v454, %v441
    %v457 = vsel %vm50, %v455, %v443
    %vm458 = vcmask 195584
    %v459 = vsel %vm458, %v456, %v449
    %v460 = vsel %vm458, %v457, %v451
    %v461 = vld [vmem:[%s4] sm:$0xff]
    %v462 = vld [vmem:[%s4 + $0x8] sm:$0xff]
    %v463 = vld [vmem:[%s4 + $0x10] sm:$0xff]
    %v464 = vld [vmem:[%s4 + $0x18] sm:$0xff]
    %v465 = vld [vmem:[%s5] sm:$0x1]
    %v467 = vlaneseq
    %v468 = vshrl.u32 %v467, 7
    %v469 = vsub.s32 0, %v468
    %v470 = vrot.slane %v465, %v469
    %vm472 = vcmask 261120
    %v474 = vsel %vm472, %v459, 0
    %v477 = vsel %vm472, %v460, 0
    %479 = vmatprep.subr.mxu0 0.0
    %480 = vmatpush1.msra.mxu0 %v461
    %481 = vmatprep.subr.mxu0 0.0
    %482 = vmatpush1.msra.mxu0 %v462
    %483 = vmatprep.subr.mxu0 0.0
    %484 = vmatpush1.msra.mxu0 %v463
    %485 = vmatprep.subr.mxu0 0.0
    %486 = vmatpush1.msra.mxu0 %v464
    %487 = vmatprep.subr.mxu0 0.0
    %488 = vmatpush1.msra.mxu0 0.0
    %489 = vmatprep.subr.mxu0 0.0
    %490 = vmatpush1.msra.mxu0 0.0
    %491 = vmatprep.subr.mxu0 0.0
    %492 = vmatpush1.msra.mxu0 0.0
    %493 = vmatprep.subr.mxu0 0.0
    %494 = vmatpush1.msra.mxu0 0.0
    %495 = vmatprep.subr.mxu0 0.0
    %496 = vmatpush1.msra.mxu0 0.0
    %497 = vmatprep.subr.mxu0 0.0
    %498 = vmatpush1.msra.mxu0 0.0
    %499 = vmatprep.subr.mxu0 0.0
    %500 = vmatpush1.msra.mxu0 0.0
    %501 = vmatprep.subr.mxu0 0.0
    %502 = vmatpush1.msra.mxu0 0.0
    %503 = vmatprep.subr.mxu0 0.0
    %504 = vmatpush1.msra.mxu0 0.0
    %505 = vmatprep.subr.mxu0 0.0
    %506 = vmatpush1.msra.mxu0 0.0
    %507 = vmatprep.subr.mxu0 0.0
    %508 = vmatpush1.msra.mxu0 0.0
    %509 = vmatprep.subr.mxu0 0.0
    %510 = vmatpush1.msra.mxu0 0.0
    %511 = vmatprep.subr.mxu0 0.0
    %512 = vmatpush1.msra.mxu0 0.0
    %513 = vmatprep.subr.mxu0 0.0
    %514 = vmatpush1.msra.mxu0 0.0
    %515 = vmatprep.subr.mxu0 0.0
    %516 = vmatpush1.msra.mxu0 0.0
    %517 = vmatprep.subr.mxu0 0.0
    %518 = vmatpush1.msra.mxu0 0.0
    %519 = vmatprep.subr.mxu0 0.0
    %520 = vmatpush1.msra.mxu0 0.0
    %521 = vmatprep.subr.mxu0 0.0
    %522 = vmatpush1.msra.mxu0 0.0
    %523 = vmatprep.subr.mxu0 0.0
    %524 = vmatpush1.msra.mxu0 0.0
    %525 = vmatprep.subr.mxu0 0.0
    %526 = vmatpush1.msra.mxu0 0.0
    %527 = vmatprep.subr.mxu0 0.0
    %528 = vmatpush1.msra.mxu0 0.0
    %529 = vmatprep.subr.mxu0 0.0
    %530 = vmatpush1.msra.mxu0 0.0
    %531 = vmatprep.subr.mxu0 0.0
    %532 = vmatpush1.msra.mxu0 0.0
    %533 = vmatprep.subr.mxu0 0.0
    %534 = vmatpush1.msra.mxu0 0.0
    %535 = vmatprep.subr.mxu0 0.0
    %536 = vmatpush1.msra.mxu0 0.0
    %537 = vmatprep.subr.mxu0 0.0
    %538 = vmatpush1.msra.mxu0 0.0
    %539 = vmatprep.subr.mxu0 0.0
    %540 = vmatpush1.msra.mxu0 0.0
    %541 = vmatprep.subr.mxu0 0.0
    %542 = vmatpush1.msra.mxu0 0.0
    %543 = vmatprep.mubr.f32.mxu0 0.0
    %544 = vmatmul.mubr.f32.gmra.mrb[0].mxu0 %v474
    %v545 = vpop.f32.mrb[0].mxu0
    %v546 = vadd.f32 %v470, %v545
    %v547 = vpop.f32.mrb[0].mxu0
    %548 = vmatprep.mubr.f32.mxu0 0.0
    %549 = vmatmul.mubr.f32.gmra.mrb[0].mxu0 %v477
    %v550 = vpop.f32.mrb[0].mxu0
    %v551 = vadd.f32 %v470, %v550
    %v552 = vpop.f32.mrb[0].mxu0
    %553 = vdwg.mxu0
    %v554 = vmax.f32 %v546, 0.0
    %v555 = vmax.f32 %v551, 0.0
    %v556 = vld [vmem:[%s6] sm:$0x3]
    %v558 = vsel %vm50, %v556, 0
    %560 = vmatprep.subr.mxu0 0.0
    %561 = vmatpush1.msra.mxu0 %v554
    %562 = vmatprep.subr.mxu0 0.0
    %563 = vmatpush1.msra.mxu0 %v555
    %564 = vmatprep.subr.mxu0 0.0
    %565 = vmatpush1.msra.mxu0 0.0
    %566 = vmatprep.subr.mxu0 0.0
    %567 = vmatpush1.msra.mxu0 0.0
    %568 = vmatprep.subr.mxu0 0.0
    %569 = vmatpush1.msra.mxu0 0.0
    %570 = vmatprep.subr.mxu0 0.0
    %571 = vmatpush1.msra.mxu0 0.0
    %572 = vmatprep.subr.mxu0 0.0
    %573 = vmatpush1.msra.mxu0 0.0
    %574 = vmatprep.subr.mxu0 0.0
    %575 = vmatpush1.msra.mxu0 0.0
    %576 = vmatprep.subr.mxu0 0.0
    %577 = vmatpush1.msra.mxu0 0.0
    %578 = vmatprep.subr.mxu0 0.0
    %579 = vmatpush1.msra.mxu0 0.0
    %580 = vmatprep.subr.mxu0 0.0
    %581 = vmatpush1.msra.mxu0 0.0
    %582 = vmatprep.subr.mxu0 0.0
    %583 = vmatpush1.msra.mxu0 0.0
    %584 = vmatprep.subr.mxu0 0.0
    %585 = vmatpush1.msra.mxu0 0.0
    %586 = vmatprep.subr.mxu0 0.0
    %587 = vmatpush1.msra.mxu0 0.0
    %588 = vmatprep.subr.mxu0 0.0
    %589 = vmatpush1.msra.mxu0 0.0
    %590 = vmatprep.subr.mxu0 0.0
    %591 = vmatpush1.msra.mxu0 0.0
    %592 = vmatprep.subr.mxu0 0.0
    %593 = vmatpush1.msra.mxu0 0.0
    %594 = vmatprep.subr.mxu0 0.0
    %595 = vmatpush1.msra.mxu0 0.0
    %596 = vmatprep.subr.mxu0 0.0
    %597 = vmatpush1.msra.mxu0 0.0
    %598 = vmatprep.subr.mxu0 0.0
    %599 = vmatpush1.msra.mxu0 0.0
    %600 = vmatprep.subr.mxu0 0.0
    %601 = vmatpush1.msra.mxu0 0.0
    %602 = vmatprep.subr.mxu0 0.0
    %603 = vmatpush1.msra.mxu0 0.0
    %604 = vmatprep.subr.mxu0 0.0
    %605 = vmatpush1.msra.mxu0 0.0
    %606 = vmatprep.subr.mxu0 0.0
    %607 = vmatpush1.msra.mxu0 0.0
    %608 = vmatprep.subr.mxu0 0.0
    %609 = vmatpush1.msra.mxu0 0.0
    %610 = vmatprep.subr.mxu0 0.0
    %611 = vmatpush1.msra.mxu0 0.0
    %612 = vmatprep.subr.mxu0 0.0
    %613 = vmatpush1.msra.mxu0 0.0
    %614 = vmatprep.subr.mxu0 0.0
    %615 = vmatpush1.msra.mxu0 0.0
    %616 = vmatprep.subr.mxu0 0.0
    %617 = vmatpush1.msra.mxu0 0.0
    %618 = vmatprep.subr.mxu0 0.0
    %619 = vmatpush1.msra.mxu0 0.0
    %620 = vmatprep.subr.mxu0 0.0
    %621 = vmatpush1.msra.mxu0 0.0
    %622 = vmatprep.subr.mxu0 0.0
    %623 = vmatpush1.msra.mxu0 0.0
    %624 = vmatprep.mubr.f32.mxu0 0.0
    %625 = vmatmul.mubr.f32.gmra.mrb[0].mxu0 %v558
    %v626 = vpop.f32.mrb[0].mxu0
    %v627 = vadd.f32 0.0, %v626
    %v628 = vpop.f32.mrb[0].mxu0
    %629 = vdwg.mxu0
    %v630 = vld [vmem:[%s8] sm:$0x3]
    %632 = vset.pattern.permute.xlu0 0
    %633 = vperm.xlu0 %632, %v630
    %v634 = vpop.permute.xlu0 %633
    %v636 = vmul.f32 %v627, %v634
    %v637 = vld [vmem:[%s7] sm:$0xff]
    %v638 = vld [vmem:[%s7 + $0x8] sm:$0xff]
    %vm639 = vcmp.gt.f32.partialorder %v637, 0.0
    %vm640 = vcmp.gt.f32.partialorder %v638, 0.0
    %v641 = vsel %vm639, 1, 0
    %v642 = vsel %vm640, 1, 0
    %643 = vset.pattern.permute.xlu0 0
    %644 = vperm.xlu0 %643, %v641
    %v645 = vpop.permute.xlu0 %644
    %646 = vset.pattern.permute.xlu0 0
    %647 = vperm.xlu0 %646, %v642
    %v648 = vpop.permute.xlu0 %647
    %vm649 = vcmp.eq.s32.totalorder %v645, 1
    %vm650 = vcmp.eq.s32.totalorder %v648, 1
    %v651 = vsel %vm649, %v554, -1e+30
    %v652 = vsel %vm650, %v555, -1e+30
    %v653 = vsel %vm50, %v651, -inf
    %v654 = vsel %vm50, %v652, -inf
    %v655 = vmax.f32 %v653, %v654
    %v656 = vrot.slane %v655, 4
    %v657 = vmax.f32 %v655, %v656
    %v658 = vrot.slane %v657, 2
    %v659 = vmax.f32 %v657, %v658
    %v660 = vrot.slane %v659, 1
    %v661 = vmax.f32 %v659, %v660
    %662 = vset.pattern.permute.xlu0 1
    %663 = vperm.xlu0 %662, %v641
    %v664 = vpop.permute.xlu0 %663
    %665 = vset.pattern.permute.xlu0 1
    %666 = vperm.xlu0 %665, %v642
    %v667 = vpop.permute.xlu0 %666
    %vm668 = vcmp.eq.s32.totalorder %v664, 1
    %vm669 = vcmp.eq.s32.totalorder %v667, 1
    %v670 = vsel %vm668, %v554, -1e+30
    %v671 = vsel %vm669, %v555, -1e+30
    %v672 = vsel %vm50, %v670, -inf
    %v673 = vsel %vm50, %v671, -inf
    %v674 = vmax.f32 %v672, %v673
    %v675 = vrot.slane %v674, 4
    %v676 = vmax.f32 %v674, %v675
    %v677 = vrot.slane %v676, 2
    %v678 = vmax.f32 %v676, %v677
    %v679 = vrot.slane %v678, 1
    %v680 = vmax.f32 %v678, %v679
    %vm681 = vcmask 1040384
    %v682 = vsel %vm681, %v661, %v680
    %684 = vrot.lane.b32.xlu0 %v636, 16
    %v685 = vpop.permute.xlu0 %684
    %v687 = vsel %vm50, %v682, %v685
    %v688 = vld [vmem:[%s9] sm:$0xff]
    %v689 = vld [vmem:[%s9 + $0x8] sm:$0xff]
    %v690 = vld [vmem:[%s9 + $0x10] sm:$0xff]
    %v691 = vld [vmem:[%s9 + $0x18] sm:$0xff]
    %v692 = vld [vmem:[%s10] sm:$0x1]
    %v694 = vlaneseq
    %v695 = vshrl.u32 %v694, 7
    %v696 = vsub.s32 0, %v695
    %v697 = vrot.slane %v692, %v696
    %v700 = vsel %vm472, %v687, 0
    %702 = vmatprep.subr.mxu0 0.0
    %703 = vmatpush1.msra.mxu0 %v688
    %704 = vmatprep.subr.mxu0 0.0
    %705 = vmatpush1.msra.mxu0 %v689
    %706 = vmatprep.subr.mxu0 0.0
    %707 = vmatpush1.msra.mxu0 %v690
    %708 = vmatprep.subr.mxu0 0.0
    %709 = vmatpush1.msra.mxu0 %v691
    %710 = vmatprep.subr.mxu0 0.0
    %711 = vmatpush1.msra.mxu0 0.0
    %712 = vmatprep.subr.mxu0 0.0
    %713 = vmatpush1.msra.mxu0 0.0
    %714 = vmatprep.subr.mxu0 0.0
    %715 = vmatpush1.msra.mxu0 0.0
    %716 = vmatprep.subr.mxu0 0.0
    %717 = vmatpush1.msra.mxu0 0.0
    %718 = vmatprep.subr.mxu0 0.0
    %719 = vmatpush1.msra.mxu0 0.0
    %720 = vmatprep.subr.mxu0 0.0
    %721 = vmatpush1.msra.mxu0 0.0
    %722 = vmatprep.subr.mxu0 0.0
    %723 = vmatpush1.msra.mxu0 0.0
    %724 = vmatprep.subr.mxu0 0.0
    %725 = vmatpush1.msra.mxu0 0.0
    %726 = vmatprep.subr.mxu0 0.0
    %727 = vmatpush1.msra.mxu0 0.0
    %728 = vmatprep.subr.mxu0 0.0
    %729 = vmatpush1.msra.mxu0 0.0
    %730 = vmatprep.subr.mxu0 0.0
    %731 = vmatpush1.msra.mxu0 0.0
    %732 = vmatprep.subr.mxu0 0.0
    %733 = vmatpush1.msra.mxu0 0.0
    %734 = vmatprep.subr.mxu0 0.0
    %735 = vmatpush1.msra.mxu0 0.0
    %736 = vmatprep.subr.mxu0 0.0
    %737 = vmatpush1.msra.mxu0 0.0
    %738 = vmatprep.subr.mxu0 0.0
    %739 = vmatpush1.msra.mxu0 0.0
    %740 = vmatprep.subr.mxu0 0.0
    %741 = vmatpush1.msra.mxu0 0.0
    %742 = vmatprep.subr.mxu0 0.0
    %743 = vmatpush1.msra.mxu0 0.0
    %744 = vmatprep.subr.mxu0 0.0
    %745 = vmatpush1.msra.mxu0 0.0
    %746 = vmatprep.subr.mxu0 0.0
    %747 = vmatpush1.msra.mxu0 0.0
    %748 = vmatprep.subr.mxu0 0.0
    %749 = vmatpush1.msra.mxu0 0.0
    %750 = vmatprep.subr.mxu0 0.0
    %751 = vmatpush1.msra.mxu0 0.0
    %752 = vmatprep.subr.mxu0 0.0
    %753 = vmatpush1.msra.mxu0 0.0
    %754 = vmatprep.subr.mxu0 0.0
    %755 = vmatpush1.msra.mxu0 0.0
    %756 = vmatprep.subr.mxu0 0.0
    %757 = vmatpush1.msra.mxu0 0.0
    %758 = vmatprep.subr.mxu0 0.0
    %759 = vmatpush1.msra.mxu0 0.0
    %760 = vmatprep.subr.mxu0 0.0
    %761 = vmatpush1.msra.mxu0 0.0
    %762 = vmatprep.subr.mxu0 0.0
    %763 = vmatpush1.msra.mxu0 0.0
    %764 = vmatprep.subr.mxu0 0.0
    %765 = vmatpush1.msra.mxu0 0.0
    %766 = vmatprep.mubr.f32.mxu0 0.0
    %767 = vmatmul.mubr.f32.gmra.mrb[0].mxu0 %v700
    %v768 = vpop.f32.mrb[0].mxu0
    %v769 = vadd.f32 %v697, %v768
    %v770 = vpop.f32.mrb[0].mxu0
    %771 = vdwg.mxu0
    %vm772 = vcmask 9216
    %773 = vst.msk [vmem:[#allocation2] sm:$0x3] %vm772, %v769
    // Predicated region
    $region46: #{tpu_custom_call.1} parent=1 // pred_check
      _
    $region47: #{tpu_custom_call.1} parent=1 // pred_check_branch
      %775 = sbr.rel (0) target = $region49
    $region48: #{tpu_custom_call.1} parent=1 // pred_region
      %s777 = ssub.s32 32, 32
      %778 = vsyncadd [#allocation3], %s777
      %s780 = sshll.u32 [#allocation2], 4
      %s781 = int_to_ptr.vmem [resolvable:$true] %s780
      %783 = dma.vmem_to_hbm [thread:$0]  %s781, 32, %s11, [#allocation3]
    $region49: #{tpu_custom_call.1} parent=1 // pred_fallthru
      _
    // Predicated region
    $region50: #{tpu_custom_call.1} parent=1 // pred_check
      _
    $region51: #{tpu_custom_call.1} parent=1 // pred_check_branch
      %785 = sbr.rel (0) target = $region53
    $region52: #{tpu_custom_call.1} parent=1 // pred_region
      %786 = dma.done [#allocation3], 32
    $region53: #{tpu_custom_call.1} parent=1 // pred_fallthru
      _
    %787 = vsyncpa [#allocation3], 1

</llo_original>
